<compile_context>
chip_gen: v5e
topology: v5e:2x2
jax: 0.10.0
libtpu: 0.0.40
codegen_flags: <defaults>
</compile_context>

<pallas_src>
import numpy as np
import jax
import jax.numpy as jnp
from jax.experimental import pallas as pl
from jax.experimental.pallas import tpu as pltpu


# ---------------------------------------------------------------------------
# Channel-mixing 1x1 conv on the VPU (no MXU).
# ---------------------------------------------------------------------------
def _mix(wT, a):
    """out[c, :] = sum_k wT[c, k] * a[k, :]  with wT = W.T (C_out, C_in), a (C_in, HW).

    C_in = 4, so this is 4 rank-1 broadcast-FMAs over lane-dense (C, HW) tiles —
    cheaper than pushing a K=4 contraction through the 128/256-wide MXU.
    """
    c_in = a.shape[0]
    acc = wT[:, 0:1] * a[0:1, :]
    for k in range(1, c_in):
        acc = acc + wT[:, k:k + 1] * a[k:k + 1, :]
    return acc


# ---------------------------------------------------------------------------
# Pallas kernel: both model calls + both sampling steps, fused per batch item.
# ---------------------------------------------------------------------------
def _sampler_kernel(coef_ref,                # SMEM (N, 8)   per-batch scalar coefficients
                    x_ref, flow_ref,         # VMEM (1, C, HW) channels-first, HW on lanes
                    temb_ref,                # VMEM (1, C, 1)  per-batch time embedding
                    wxT_ref, wfT_ref,        # VMEM (C, C)     transposed 1x1-conv weights
                    out_ref):                # VMEM (1, C, HW)
    b = pl.program_id(0)

    c_sqrt_beta   = coef_ref[b, 0]   # sqrt(beta_t)
    c_inv_sqrt_at = coef_ref[b, 1]   # 1 / sqrt(at)
    c_sqrt_atm1   = coef_ref[b, 2]   # sqrt(atm1)
    c_sqrt_1matm1 = coef_ref[b, 3]   # sqrt(1 - atm1)
    c_sqrt_invat  = coef_ref[b, 4]   # sqrt(1 / at)
    c_sqrt_invatm = coef_ref[b, 5]   # sqrt(1 / at - 1)
    c_mean_x0     = coef_ref[b, 6]   # sqrt(atm1) * beta_t / (1 - at)
    c_mean_x      = coef_ref[b, 7]   # sqrt(1 - beta_t) * (1 - atm1) / (1 - at)

    x = x_ref[0]                     # (C, HW)
    f = flow_ref[0]                  # (C, HW)
    temb = temb_ref[0]               # (C, 1)
    wxT = wxT_ref[...]
    wfT = wfT_ref[...]

    # flow contribution + time embedding are shared between the two model calls
    f_contrib = _mix(wfT, f) + temb

    # ---- model call 1 + forward step (first loop of ddpm_steps) ----
    eps1 = _mix(wxT, x) + f_contrib
    next_orig = (x - c_sqrt_beta * eps1) * c_inv_sqrt_at
    x1 = c_sqrt_atm1 * next_orig + c_sqrt_1matm1 * eps1

    # ---- model call 2 + reverse DDPM step (second loop of ddpm_steps) ----
    eps2 = _mix(wxT, x1) + f_contrib
    x0 = jnp.clip(c_sqrt_invat * x1 - c_sqrt_invatm * eps2, -1.0, 1.0)
    mean = c_mean_x0 * x0 + c_mean_x * x1

    # For skip = T // 1 the only reverse step has t == 0, so mask == 0 and the noise
    # term mask * exp(0.5 * log(beta_t)) * randn is identically zero -> not streamed.
    # TODO(synk): re-enable a noise input + mask gating if reused with skip < T
    #             (multi-step sampling), where intermediate reverse steps do add noise.
    out_ref[0] = mean.astype(out_ref.dtype)


# ---------------------------------------------------------------------------
# Scalar coefficient prep (mirrors compute_alpha / the torch .double() buffers)
# ---------------------------------------------------------------------------
def _compute_coefs(beta_1, beta_T_val, T, N):
    betas = np.linspace(beta_1, beta_T_val, T, dtype=np.float64)
    alphas_cum = np.cumprod(1.0 - np.concatenate([[0.0], betas]))  # compute_alpha table

    # seq = range(0, T, T // 1) == [0]  ->  single (i=0, j=-1) step in both loops
    t = np.zeros((N,), dtype=np.int64)
    next_t = -np.ones((N,), dtype=np.int64)

    at = alphas_cum[t + 1]
    atm1 = alphas_cum[next_t + 1]
    beta_t = 1.0 - at / atm1
    mask = 1.0 - (t == 0).astype(np.float64)       # == 0 here, noise term vanishes

    coefs = np.stack(
        [
            np.sqrt(beta_t),
            1.0 / np.sqrt(at),
            np.sqrt(atm1),
            np.sqrt(1.0 - atm1),
            np.sqrt(1.0 / at),
            np.sqrt(1.0 / at - 1.0),
            np.sqrt(atm1) * beta_t / (1.0 - at),
            np.sqrt(1.0 - beta_t) * (1.0 - atm1) / (1.0 - at),
            mask * np.exp(0.5 * np.log(beta_t)),    # noise coefficient (== 0 here)
        ],
        axis=1,
    ).astype(np.float32)                           # (N, 9)
    return coefs, t


# ---------------------------------------------------------------------------
# Wrapper: NCHW -> (N, C, HW) channels-first plumbing + pallas_call
# ---------------------------------------------------------------------------
def gaussian_diffusion_sampler(x_T, flow, wx, wf, temb_table, beta_1, beta_T_val, T):
    N, C, H, W = x_T.shape
    HW = H * W
    coefs, t = _compute_coefs(beta_1, beta_T_val, T, N)
    temb_col = jnp.asarray(temb_table)[np.asarray(t)].reshape(N, C, 1)   # per-batch (C,1)

    # channels-first: a pure reshape (no transpose) keeps HW on the lane axis
    x_seq = x_T.reshape(N, C, HW)
    flow_seq = flow.reshape(N, C, HW)

    out = pl.pallas_call(
        _sampler_kernel,
        out_shape=jax.ShapeDtypeStruct((N, C, HW), jnp.float32),
        grid_spec=pltpu.PrefetchScalarGridSpec(
            num_scalar_prefetch=1,                 # per-batch coefficients land in SMEM
            grid=(N,),                             # N = 2 parallel steps -> 2 TCs on v7x
            in_specs=[
                pl.BlockSpec((1, C, HW), lambda b, coefs: (b, 0, 0)),   # x
                pl.BlockSpec((1, C, HW), lambda b, coefs: (b, 0, 0)),   # flow
                pl.BlockSpec((1, C, 1),  lambda b, coefs: (b, 0, 0)),   # temb (per batch)
                pl.BlockSpec((C, C),     lambda b, coefs: (0, 0)),      # Wx^T (tiny, resident)
                pl.BlockSpec((C, C),     lambda b, coefs: (0, 0)),      # Wf^T (tiny, resident)
            ],
            out_specs=pl.BlockSpec((1, C, HW), lambda b, coefs: (b, 0, 0)),
        ),
        compiler_params=pltpu.CompilerParams(dimension_semantics=("parallel",)),
        # NOTE: at production H/W/C sizes, add an HW tiling axis to the grid and set
        # vmem_limit_bytes explicitly (v7x has 64 MiB VMEM vs 128 MiB on v5e/v6e).
    )(
        jnp.asarray(coefs[:, :8]),                 # noise coefficient (idx 8) dropped
        x_seq, flow_seq, temb_col,
        jnp.asarray(wx).T, jnp.asarray(wf).T,      # transposed weights for channels-first mix
    )

    return out.reshape(N, C, H, W)                 # reshape back, still NCHW


# ---------------------------------------------------------------------------
# Pure-JAX reference (NCHW, same math, including the zero noise term)
# ---------------------------------------------------------------------------
def reference_sampler(x_T, flow, wx, wf, temb_table, beta_1, beta_T_val, T, noise):
    N, C, H, W = x_T.shape
    coefs, t = _compute_coefs(beta_1, beta_T_val, T, N)
    temb_b = jnp.asarray(temb_table)[np.asarray(t)]            # (N, C)
    c = [jnp.asarray(coefs[:, i]).reshape(N, 1, 1, 1) for i in range(9)]

    def model(x):
        xs = jnp.einsum("nchw,cd->ndhw", x, wx, precision="highest")
        fs = jnp.einsum("nchw,cd->ndhw", flow, wf, precision="highest")
        return xs + fs + temb_b[:, :, None, None]

    eps1 = model(x_T)
    x1 = c[2] * ((x_T - c[0] * eps1) * c[1]) + c[3] * eps1
    eps2 = model(x1)
    x0 = jnp.clip(c[4] * x1 - c[5] * eps2, -1.0, 1.0)
    mean = c[6] * x0 + c[7] * x1
    return mean + c[8] * noise                                 # c[8] == 0 for skip = T // 1


if __name__ == "__main__":
    key = jax.random.PRNGKey(0)
    k1, k2, k3, k4, k5, k6 = jax.random.split(key, 6)

    N, C, H, W = 2, 4, 16, 16
    T = 8
    beta_1, beta_T_val = 1e-4, 0.02

    x_T = jax.random.normal(k1, (N, C, H, W), jnp.float32)
    flow = jax.random.normal(k2, (N, C, H, W), jnp.float32)
    # TODO(synk): torch.randn_like(x) uses torch's stateful RNG; here Gaussian noise is
    # drawn in plain JAX and only feeds the reference (it is multiplied by mask == 0).
    noise = jax.random.normal(k3, (N, C, H, W), jnp.float32)

    # deterministic synthetic model parameters (1x1-conv epsilon predictor)
    wx = 0.1 * jax.random.normal(k4, (C, C), jnp.float32)
    wf = 0.1 * jax.random.normal(k5, (C, C), jnp.float32)
    temb_table = 0.1 * jax.random.normal(k6, (T, C), jnp.float32)

    out = gaussian_diffusion_sampler(x_T, flow, wx, wf, temb_table, beta_1, beta_T_val, T)
    out = jax.block_until_ready(out)

    ref = reference_sampler(x_T, flow, wx, wf, temb_table, beta_1, beta_T_val, T, noise)
    ref = jax.block_until_ready(ref)

    assert out.shape == (N, C, H, W) and out.dtype == jnp.float32
    np.testing.assert_allclose(np.asarray(out), np.asarray(ref), rtol=1e-3, atol=1e-3)
    print("KERNEL_OK")
</pallas_src>

<mosaic_0001>
module attributes {stable_mosaic.version = 11 : i64} {
  func.func @_sampler_kernel(%arg0: i32, %arg1: memref<2x8xf32, #tpu.memory_space<smem>>, %arg2: memref<1x4x256xf32, #tpu.memory_space<vmem>>, %arg3: memref<1x4x256xf32, #tpu.memory_space<vmem>>, %arg4: memref<1x4x1xf32, #tpu.memory_space<vmem>>, %arg5: memref<4x4xf32, #tpu.memory_space<vmem>>, %arg6: memref<4x4xf32, #tpu.memory_space<vmem>>, %arg7: memref<1x4x256xf32, #tpu.memory_space<vmem>>) attributes {dimension_semantics = [#tpu.dimension_semantics<parallel>], iteration_bounds = array<i64: 2>, scalar_prefetch = 1 : i64, scratch_operands = 0 : i64, tpu.core_type = #tpu.core_type<tc>, window_params = [{transform_indices = @transform_0, window_bounds = array<i64: 1, 4, 256>}, {transform_indices = @transform_1, window_bounds = array<i64: 1, 4, 256>}, {transform_indices = @transform_2, window_bounds = array<i64: 1, 4, 1>}, {pipeline_mode = #tpu.pipeline_mode<synchronous>, transform_indices = @transform_3, window_bounds = array<i64: 4, 4>}, {pipeline_mode = #tpu.pipeline_mode<synchronous>, transform_indices = @transform_4, window_bounds = array<i64: 4, 4>}, {transform_indices = @transform_5, window_bounds = array<i64: 1, 4, 256>}]} {
    %0 = arith.index_cast %arg0 : i32 to index
    %c0 = arith.constant 0 : index
    %1 = memref.load %arg1[%0, %c0] : memref<2x8xf32, #tpu.memory_space<smem>>
    %2 = arith.index_cast %arg0 : i32 to index
    %c1 = arith.constant 1 : index
    %3 = memref.load %arg1[%2, %c1] : memref<2x8xf32, #tpu.memory_space<smem>>
    %4 = arith.index_cast %arg0 : i32 to index
    %c2 = arith.constant 2 : index
    %5 = memref.load %arg1[%4, %c2] : memref<2x8xf32, #tpu.memory_space<smem>>
    %6 = arith.index_cast %arg0 : i32 to index
    %c3 = arith.constant 3 : index
    %7 = memref.load %arg1[%6, %c3] : memref<2x8xf32, #tpu.memory_space<smem>>
    %8 = arith.index_cast %arg0 : i32 to index
    %c4 = arith.constant 4 : index
    %9 = memref.load %arg1[%8, %c4] : memref<2x8xf32, #tpu.memory_space<smem>>
    %10 = arith.index_cast %arg0 : i32 to index
    %c5 = arith.constant 5 : index
    %11 = memref.load %arg1[%10, %c5] : memref<2x8xf32, #tpu.memory_space<smem>>
    %12 = arith.index_cast %arg0 : i32 to index
    %c6 = arith.constant 6 : index
    %13 = memref.load %arg1[%12, %c6] : memref<2x8xf32, #tpu.memory_space<smem>>
    %14 = arith.index_cast %arg0 : i32 to index
    %c7 = arith.constant 7 : index
    %15 = memref.load %arg1[%14, %c7] : memref<2x8xf32, #tpu.memory_space<smem>>
    %c0_0 = arith.constant 0 : index
    %c0_1 = arith.constant 0 : index
    %c0_2 = arith.constant 0 : index
    %16 = vector.load %arg2[%c0_0, %c0_1, %c0_2] : memref<1x4x256xf32, #tpu.memory_space<vmem>>, vector<1x4x256xf32>
    %17 = vector.shape_cast %16 : vector<1x4x256xf32> to vector<4x256xf32>
    %c0_3 = arith.constant 0 : index
    %c0_4 = arith.constant 0 : index
    %c0_5 = arith.constant 0 : index
    %18 = vector.load %arg3[%c0_3, %c0_4, %c0_5] : memref<1x4x256xf32, #tpu.memory_space<vmem>>, vector<1x4x256xf32>
    %19 = vector.shape_cast %18 : vector<1x4x256xf32> to vector<4x256xf32>
    %c0_6 = arith.constant 0 : index
    %c0_7 = arith.constant 0 : index
    %c0_8 = arith.constant 0 : index
    %20 = vector.load %arg4[%c0_6, %c0_7, %c0_8] : memref<1x4x1xf32, #tpu.memory_space<vmem>>, vector<1x4x1xf32>
    %21 = vector.shape_cast %20 : vector<1x4x1xf32> to vector<4x1xf32>
    %c0_9 = arith.constant 0 : index
    %c0_10 = arith.constant 0 : index
    %22 = vector.load %arg5[%c0_9, %c0_10] : memref<4x4xf32, #tpu.memory_space<vmem>>, vector<4x4xf32>
    %c0_11 = arith.constant 0 : index
    %c0_12 = arith.constant 0 : index
    %23 = vector.load %arg6[%c0_11, %c0_12] : memref<4x4xf32, #tpu.memory_space<vmem>>, vector<4x4xf32>
    %24 = vector.extract_strided_slice %23 {offsets = [0, 0], sizes = [4, 1], strides = [1, 1]} : vector<4x4xf32> to vector<4x1xf32>
    %25 = vector.extract_strided_slice %19 {offsets = [0, 0], sizes = [1, 256], strides = [1, 1]} : vector<4x256xf32> to vector<1x256xf32>
    %26 = vector.broadcast %24 : vector<4x1xf32> to vector<4x256xf32>
    %27 = vector.broadcast %25 : vector<1x256xf32> to vector<4x256xf32>
    %28 = arith.mulf %26, %27 : vector<4x256xf32>
    %29 = vector.extract_strided_slice %23 {offsets = [0, 1], sizes = [4, 1], strides = [1, 1]} : vector<4x4xf32> to vector<4x1xf32>
    %30 = vector.extract_strided_slice %19 {offsets = [1, 0], sizes = [1, 256], strides = [1, 1]} : vector<4x256xf32> to vector<1x256xf32>
    %31 = vector.broadcast %29 : vector<4x1xf32> to vector<4x256xf32>
    %32 = vector.broadcast %30 : vector<1x256xf32> to vector<4x256xf32>
    %33 = arith.mulf %31, %32 : vector<4x256xf32>
    %34 = arith.addf %28, %33 : vector<4x256xf32>
    %35 = vector.extract_strided_slice %23 {offsets = [0, 2], sizes = [4, 1], strides = [1, 1]} : vector<4x4xf32> to vector<4x1xf32>
    %36 = vector.extract_strided_slice %19 {offsets = [2, 0], sizes = [1, 256], strides = [1, 1]} : vector<4x256xf32> to vector<1x256xf32>
    %37 = vector.broadcast %35 : vector<4x1xf32> to vector<4x256xf32>
    %38 = vector.broadcast %36 : vector<1x256xf32> to vector<4x256xf32>
    %39 = arith.mulf %37, %38 : vector<4x256xf32>
    %40 = arith.addf %34, %39 : vector<4x256xf32>
    %41 = vector.extract_strided_slice %23 {offsets = [0, 3], sizes = [4, 1], strides = [1, 1]} : vector<4x4xf32> to vector<4x1xf32>
    %42 = vector.extract_strided_slice %19 {offsets = [3, 0], sizes = [1, 256], strides = [1, 1]} : vector<4x256xf32> to vector<1x256xf32>
    %43 = vector.broadcast %41 : vector<4x1xf32> to vector<4x256xf32>
    %44 = vector.broadcast %42 : vector<1x256xf32> to vector<4x256xf32>
    %45 = arith.mulf %43, %44 : vector<4x256xf32>
    %46 = arith.addf %40, %45 : vector<4x256xf32>
    %47 = vector.broadcast %21 : vector<4x1xf32> to vector<4x256xf32>
    %48 = arith.addf %46, %47 : vector<4x256xf32>
    %49 = vector.extract_strided_slice %22 {offsets = [0, 0], sizes = [4, 1], strides = [1, 1]} : vector<4x4xf32> to vector<4x1xf32>
    %50 = vector.extract_strided_slice %17 {offsets = [0, 0], sizes = [1, 256], strides = [1, 1]} : vector<4x256xf32> to vector<1x256xf32>
    %51 = vector.broadcast %49 : vector<4x1xf32> to vector<4x256xf32>
    %52 = vector.broadcast %50 : vector<1x256xf32> to vector<4x256xf32>
    %53 = arith.mulf %51, %52 : vector<4x256xf32>
    %54 = vector.extract_strided_slice %22 {offsets = [0, 1], sizes = [4, 1], strides = [1, 1]} : vector<4x4xf32> to vector<4x1xf32>
    %55 = vector.extract_strided_slice %17 {offsets = [1, 0], sizes = [1, 256], strides = [1, 1]} : vector<4x256xf32> to vector<1x256xf32>
    %56 = vector.broadcast %54 : vector<4x1xf32> to vector<4x256xf32>
    %57 = vector.broadcast %55 : vector<1x256xf32> to vector<4x256xf32>
    %58 = arith.mulf %56, %57 : vector<4x256xf32>
    %59 = arith.addf %53, %58 : vector<4x256xf32>
    %60 = vector.extract_strided_slice %22 {offsets = [0, 2], sizes = [4, 1], strides = [1, 1]} : vector<4x4xf32> to vector<4x1xf32>
    %61 = vector.extract_strided_slice %17 {offsets = [2, 0], sizes = [1, 256], strides = [1, 1]} : vector<4x256xf32> to vector<1x256xf32>
    %62 = vector.broadcast %60 : vector<4x1xf32> to vector<4x256xf32>
    %63 = vector.broadcast %61 : vector<1x256xf32> to vector<4x256xf32>
    %64 = arith.mulf %62, %63 : vector<4x256xf32>
    %65 = arith.addf %59, %64 : vector<4x256xf32>
    %66 = vector.extract_strided_slice %22 {offsets = [0, 3], sizes = [4, 1], strides = [1, 1]} : vector<4x4xf32> to vector<4x1xf32>
    %67 = vector.extract_strided_slice %17 {offsets = [3, 0], sizes = [1, 256], strides = [1, 1]} : vector<4x256xf32> to vector<1x256xf32>
    %68 = vector.broadcast %66 : vector<4x1xf32> to vector<4x256xf32>
    %69 = vector.broadcast %67 : vector<1x256xf32> to vector<4x256xf32>
    %70 = arith.mulf %68, %69 : vector<4x256xf32>
    %71 = arith.addf %65, %70 : vector<4x256xf32>
    %72 = arith.addf %71, %48 : vector<4x256xf32>
    %73 = vector.broadcast %1 : f32 to vector<4x256xf32>
    %74 = arith.mulf %73, %72 : vector<4x256xf32>
    %75 = arith.subf %17, %74 : vector<4x256xf32>
    %76 = vector.broadcast %3 : f32 to vector<4x256xf32>
    %77 = arith.mulf %75, %76 : vector<4x256xf32>
    %78 = vector.broadcast %5 : f32 to vector<4x256xf32>
    %79 = arith.mulf %78, %77 : vector<4x256xf32>
    %80 = vector.broadcast %7 : f32 to vector<4x256xf32>
    %81 = arith.mulf %80, %72 : vector<4x256xf32>
    %82 = arith.addf %79, %81 : vector<4x256xf32>
    %83 = vector.extract_strided_slice %22 {offsets = [0, 0], sizes = [4, 1], strides = [1, 1]} : vector<4x4xf32> to vector<4x1xf32>
    %84 = vector.extract_strided_slice %82 {offsets = [0, 0], sizes = [1, 256], strides = [1, 1]} : vector<4x256xf32> to vector<1x256xf32>
    %85 = vector.broadcast %83 : vector<4x1xf32> to vector<4x256xf32>
    %86 = vector.broadcast %84 : vector<1x256xf32> to vector<4x256xf32>
    %87 = arith.mulf %85, %86 : vector<4x256xf32>
    %88 = vector.extract_strided_slice %22 {offsets = [0, 1], sizes = [4, 1], strides = [1, 1]} : vector<4x4xf32> to vector<4x1xf32>
    %89 = vector.extract_strided_slice %82 {offsets = [1, 0], sizes = [1, 256], strides = [1, 1]} : vector<4x256xf32> to vector<1x256xf32>
    %90 = vector.broadcast %88 : vector<4x1xf32> to vector<4x256xf32>
    %91 = vector.broadcast %89 : vector<1x256xf32> to vector<4x256xf32>
    %92 = arith.mulf %90, %91 : vector<4x256xf32>
    %93 = arith.addf %87, %92 : vector<4x256xf32>
    %94 = vector.extract_strided_slice %22 {offsets = [0, 2], sizes = [4, 1], strides = [1, 1]} : vector<4x4xf32> to vector<4x1xf32>
    %95 = vector.extract_strided_slice %82 {offsets = [2, 0], sizes = [1, 256], strides = [1, 1]} : vector<4x256xf32> to vector<1x256xf32>
    %96 = vector.broadcast %94 : vector<4x1xf32> to vector<4x256xf32>
    %97 = vector.broadcast %95 : vector<1x256xf32> to vector<4x256xf32>
    %98 = arith.mulf %96, %97 : vector<4x256xf32>
    %99 = arith.addf %93, %98 : vector<4x256xf32>
    %100 = vector.extract_strided_slice %22 {offsets = [0, 3], sizes = [4, 1], strides = [1, 1]} : vector<4x4xf32> to vector<4x1xf32>
    %101 = vector.extract_strided_slice %82 {offsets = [3, 0], sizes = [1, 256], strides = [1, 1]} : vector<4x256xf32> to vector<1x256xf32>
    %102 = vector.broadcast %100 : vector<4x1xf32> to vector<4x256xf32>
    %103 = vector.broadcast %101 : vector<1x256xf32> to vector<4x256xf32>
    %104 = arith.mulf %102, %103 : vector<4x256xf32>
    %105 = arith.addf %99, %104 : vector<4x256xf32>
    %106 = arith.addf %105, %48 : vector<4x256xf32>
    %107 = vector.broadcast %9 : f32 to vector<4x256xf32>
    %108 = arith.mulf %107, %82 : vector<4x256xf32>
    %109 = vector.broadcast %11 : f32 to vector<4x256xf32>
    %110 = arith.mulf %109, %106 : vector<4x256xf32>
    %111 = arith.subf %108, %110 : vector<4x256xf32>
    %cst = arith.constant -1.000000e+00 : f32
    %cst_13 = arith.constant 1.000000e+00 : f32
    %112 = vector.broadcast %cst : f32 to vector<4x256xf32>
    %113 = arith.maximumf %112, %111 : vector<4x256xf32>
    %114 = vector.broadcast %cst_13 : f32 to vector<4x256xf32>
    %115 = arith.minimumf %114, %113 : vector<4x256xf32>
    %116 = vector.broadcast %13 : f32 to vector<4x256xf32>
    %117 = arith.mulf %116, %115 : vector<4x256xf32>
    %118 = vector.broadcast %15 : f32 to vector<4x256xf32>
    %119 = arith.mulf %118, %82 : vector<4x256xf32>
    %120 = arith.addf %117, %119 : vector<4x256xf32>
    %c0_14 = arith.constant 0 : index
    %c0_15 = arith.constant 0 : index
    %c0_16 = arith.constant 0 : index
    %121 = vector.load %arg7[%c0_14, %c0_15, %c0_16] : memref<1x4x256xf32, #tpu.memory_space<vmem>>, vector<1x4x256xf32>
    %122 = vector.shape_cast %121 : vector<1x4x256xf32> to vector<4x256xf32>
    %123 = vector.shape_cast %120 : vector<4x256xf32> to vector<1x4x256xf32>
    tpu.vector_store %arg7[%c0_14, %c0_15, %c0_16], %123 {strides = array<i32>} : memref<1x4x256xf32, #tpu.memory_space<vmem>>, vector<1x4x256xf32>,
    return
  }
  func.func @transform_0(%arg0: i32, %arg1: memref<2x8xf32, #tpu.memory_space<smem>>) -> (i32, i32, i32) {
    %c0_i32 = arith.constant 0 : i32
    %c0_i32_0 = arith.constant 0 : i32
    %c0_i32_1 = arith.constant 0 : i32
    return %arg0, %c0_i32, %c0_i32_0 : i32, i32, i32
  }
  func.func @transform_1(%arg0: i32, %arg1: memref<2x8xf32, #tpu.memory_space<smem>>) -> (i32, i32, i32) {
    %c0_i32 = arith.constant 0 : i32
    %c0_i32_0 = arith.constant 0 : i32
    %c0_i32_1 = arith.constant 0 : i32
    return %arg0, %c0_i32, %c0_i32_0 : i32, i32, i32
  }
  func.func @transform_2(%arg0: i32, %arg1: memref<2x8xf32, #tpu.memory_space<smem>>) -> (i32, i32, i32) {
    %c0_i32 = arith.constant 0 : i32
    %c0_i32_0 = arith.constant 0 : i32
    %c0_i32_1 = arith.constant 0 : i32
    return %arg0, %c0_i32, %c0_i32_0 : i32, i32, i32
  }
  func.func @transform_3(%arg0: i32, %arg1: memref<2x8xf32, #tpu.memory_space<smem>>) -> (i32, i32) {
    %c0_i32 = arith.constant 0 : i32
    %c0_i32_0 = arith.constant 0 : i32
    %c0_i32_1 = arith.constant 0 : i32
    return %c0_i32, %c0_i32_0 : i32, i32
  }
  func.func @transform_4(%arg0: i32, %arg1: memref<2x8xf32, #tpu.memory_space<smem>>) -> (i32, i32) {
    %c0_i32 = arith.constant 0 : i32
    %c0_i32_0 = arith.constant 0 : i32
    %c0_i32_1 = arith.constant 0 : i32
    return %c0_i32, %c0_i32_0 : i32, i32
  }
  func.func @transform_5(%arg0: i32, %arg1: memref<2x8xf32, #tpu.memory_space<smem>>) -> (i32, i32, i32) {
    %c0_i32 = arith.constant 0 : i32
    %c0_i32_0 = arith.constant 0 : i32
    %c0_i32_1 = arith.constant 0 : i32
    return %arg0, %c0_i32, %c0_i32_0 : i32, i32, i32
  }
}

</mosaic_0001>

<llo_original>
// kernel: tpu_custom_call.1
$region0: #{tpu_custom_call.1}
  #allocation0 [shape = 'u32[]', space=smem, size = 0x4, offset = 0x4, fixed_abs, tag = 'smem constant byte address 0x4 - core index']
  #allocation1 [shape = 'u32[72,128]{1,0:T(1,128)}', space=vmem, size = 0x9000, scoped, tag = 'internal scratch']
  #allocation2 [shape = 's32[1]{0}', space=sflag, size = 0x4, scoped, tag = 'scoped memory for tpu_custom_call.1']
  #allocation3 [shape = 'u8[1024]{0}', space=smem, size = 0x400, scoped, tag = 'prefetched SMEM operand 0']
  %s0 = inlined_call_operand.vmem [shape: f32[2,8], index: 0, kind: input, shape index: {}]
  %s1 = inlined_call_operand.hbm [shape: f32[2,4,256], index: 1, kind: input, shape index: {}]
  %s2 = inlined_call_operand.hbm [shape: f32[2,4,256], index: 2, kind: input, shape index: {}]
  %s3 = inlined_call_operand.vmem [shape: f32[2,4,1], index: 3, kind: input, shape index: {}]
  %s4 = inlined_call_operand.vmem [shape: f32[4,4], index: 4, kind: input, shape index: {}]
  %s5 = inlined_call_operand.vmem [shape: f32[4,4], index: 5, kind: input, shape index: {}]
  %s6 = inlined_call_operand.hbm [shape: f32[2,4,256], index: 6, kind: output, shape index: {}]
  %s7 = sld [smem:[#allocation0]]
  $region61: #{tpu_custom_call.1} parent=0
    _
  %s9 = ssub.s32 1, %s7
  %s10 = scalar_select 0, %s9, %s7
  %s12 = sshll.u32 %s0, 4
  %s13 = int_to_ptr.vmem [resolvable:$true] %s12
  %15 = dma.vmem_to_smem %s13, 32, [#allocation3], [#allocation2]
  %17 = dma.done [#allocation2], 32
  %18 = sfence
  $region1: #{tpu_custom_call.1} parent=0
    #allocation4 [shape = 'u8[8192]{0}', space=vmem, size = 0x2000, scoped, tag = 'input window, operand 1']
    #allocation5 [shape = 's32[2]{0}', space=sflag, size = 0x8, scoped, tag = 'scoped memory for tpu_custom_call.1']
    #allocation6 [shape = 's32[2]{0}', space=sflag, size = 0x8, scoped, tag = 'scoped memory for tpu_custom_call.1']
    #allocation7 [shape = 'u8[8192]{0}', space=vmem, size = 0x2000, scoped, tag = 'input window, operand 2']
    #allocation8 [shape = 's32[2]{0}', space=sflag, size = 0x8, scoped, tag = 'scoped memory for tpu_custom_call.1']
    #allocation9 [shape = 'u8[8192]{0}', space=vmem, size = 0x2000, scoped, tag = 'output window, operand 0']
    %19 = vsyncpa [#allocation5], 0
    %s20 = scalar_lea.sflag [#allocation5], 1
    %21 = vsyncpa %s20, 0
    %22 = vsyncpa [#allocation8], 0
    %s23 = scalar_lea.sflag [#allocation8], 1
    %24 = vsyncpa %s23, 0
    %25 = vsyncpa [#allocation6], 0
    %s26 = scalar_lea.sflag [#allocation6], 1
    %27 = vsyncpa %s26, 0
    loop: start=0, step=1, limit=4
    $region2: #{tpu_custom_call.1} parent=1 // loop_pre_header
      _
    $region3: #{tpu_custom_call.1} parent=1 // loop_header
      %s29 = sphi 0, %s33
      %p30 = scmp.ge.s32.totalorder %s29, 4
      %s39 = sphi 0, %s41
      %s42 = sphi 0, %s39
      %s43 = sphi 0, %s42
      %s59 = sphi 0, %s43
      %s65 = sphi 0, %s67
      %s68 = sphi 0, %s65
      %s69 = sphi 0, %s68
      %s85 = sphi 0, %s69
      %s91 = sphi 0, %s93
      %s94 = sphi 0, %s91
      %s95 = sphi 0, %s94
      %s111 = sphi 0, %s95
      %s115 = sphi 0, %s115
      %s117 = sphi 0, %s115
      %s118 = sphi 0, %s117
      %s132 = sphi 0, %s118
      %s136 = sphi 0, %s136
      %s138 = sphi 0, %s136
      %s139 = sphi 0, %s138
      %s153 = sphi 0, %s139
      %s159 = sphi 0, %s161
      %s162 = sphi 0, %s159
      %s163 = sphi 0, %s162
      %s179 = sphi 0, %s163
    $region4: #{tpu_custom_call.1} parent=1 // loop_header_branch
      %32 = sbr.rel (%p30) target = $region8
    $region5: #{tpu_custom_call.1} parent=1 // loop_body
      %s34 = ssub.s32 %s29, 1
      %s35 = ssub.s32 %s29, 2
      %s36 = sadd.s32 %s29, 1
      %s37 = ssub.s32 %s29, %s36
      %p38 = scmp.eq.s32.totalorder %s37, 0
      %s40 = sadd.s32 %s39, 1
      %s41 = scalar_select %p38, %s39, %s40
      %p44 = pneg %p38
      %p45 = scmp.eq.s32.totalorder %s29, 1
      %p46 = por %p44, %p45
      %p47 = scmp.ne.s32.totalorder %s39, %s42
      %p48 = scmp.eq.s32.totalorder %s29, 0
      %p49 = por %p47, %p48
      %p50 = scmp.ne.s32.totalorder %s39, %s42
      %p51 = scmp.eq.s32.totalorder %s34, 1
      %p52 = por %p50, %p51
      %p53 = scmp.ne.s32.totalorder %s42, %s43
      %p54 = scmp.eq.s32.totalorder %s34, 0
      %p55 = por %p53, %p54
      %p56 = scmp.ne.s32.totalorder %s42, %s43
      %p57 = scmp.eq.s32.totalorder %s35, 1
      %p58 = por %p56, %p57
      %p60 = scmp.ne.s32.totalorder %s43, %s59
      %p61 = scmp.eq.s32.totalorder %s35, 0
      %p62 = por %p60, %p61
      %s63 = ssub.s32 %s29, %s36
      %p64 = scmp.eq.s32.totalorder %s63, 0
      %s66 = sadd.s32 %s65, 1
      %s67 = scalar_select %p64, %s65, %s66
      %p70 = pneg %p64
      %p71 = scmp.eq.s32.totalorder %s29, 1
      %p72 = por %p70, %p71
      %p73 = scmp.ne.s32.totalorder %s65, %s68
      %p74 = scmp.eq.s32.totalorder %s29, 0
      %p75 = por %p73, %p74
      %p76 = scmp.ne.s32.totalorder %s65, %s68
      %p77 = scmp.eq.s32.totalorder %s34, 1
      %p78 = por %p76, %p77
      %p79 = scmp.ne.s32.totalorder %s68, %s69
      %p80 = scmp.eq.s32.totalorder %s34, 0
      %p81 = por %p79, %p80
      %p82 = scmp.ne.s32.totalorder %s68, %s69
      %p83 = scmp.eq.s32.totalorder %s35, 1
      %p84 = por %p82, %p83
      %p86 = scmp.ne.s32.totalorder %s69, %s85
      %p87 = scmp.eq.s32.totalorder %s35, 0
      %p88 = por %p86, %p87
      %s89 = ssub.s32 %s29, %s36
      %p90 = scmp.eq.s32.totalorder %s89, 0
      %s92 = sadd.s32 %s91, 1
      %s93 = scalar_select %p90, %s91, %s92
      %p96 = pneg %p90
      %p97 = scmp.eq.s32.totalorder %s29, 1
      %p98 = por %p96, %p97
      %p99 = scmp.ne.s32.totalorder %s91, %s94
      %p100 = scmp.eq.s32.totalorder %s29, 0
      %p101 = por %p99, %p100
      %p102 = scmp.ne.s32.totalorder %s91, %s94
      %p103 = scmp.eq.s32.totalorder %s34, 1
      %p104 = por %p102, %p103
      %p105 = scmp.ne.s32.totalorder %s94, %s95
      %p106 = scmp.eq.s32.totalorder %s34, 0
      %p107 = por %p105, %p106
      %p108 = scmp.ne.s32.totalorder %s94, %s95
      %p109 = scmp.eq.s32.totalorder %s35, 1
      %p110 = por %p108, %p109
      %p112 = scmp.ne.s32.totalorder %s95, %s111
      %p113 = scmp.eq.s32.totalorder %s35, 0
      %p114 = por %p112, %p113
      %s116 = sadd.s32 %s115, 1
      %p119 = scmp.eq.s32.totalorder %s29, 1
      %p120 = scmp.ne.s32.totalorder %s115, %s117
      %p121 = scmp.eq.s32.totalorder %s29, 0
      %p122 = por %p120, %p121
      %p123 = scmp.ne.s32.totalorder %s115, %s117
      %p124 = scmp.eq.s32.totalorder %s34, 1
      %p125 = por %p123, %p124
      %p126 = scmp.ne.s32.totalorder %s117, %s118
      %p127 = scmp.eq.s32.totalorder %s34, 0
      %p128 = por %p126, %p127
      %p129 = scmp.ne.s32.totalorder %s117, %s118
      %p130 = scmp.eq.s32.totalorder %s35, 1
      %p131 = por %p129, %p130
      %p133 = scmp.ne.s32.totalorder %s118, %s132
      %p134 = scmp.eq.s32.totalorder %s35, 0
      %p135 = por %p133, %p134
      %s137 = sadd.s32 %s136, 1
      %p140 = scmp.eq.s32.totalorder %s29, 1
      %p141 = scmp.ne.s32.totalorder %s136, %s138
      %p142 = scmp.eq.s32.totalorder %s29, 0
      %p143 = por %p141, %p142
      %p144 = scmp.ne.s32.totalorder %s136, %s138
      %p145 = scmp.eq.s32.totalorder %s34, 1
      %p146 = por %p144, %p145
      %p147 = scmp.ne.s32.totalorder %s138, %s139
      %p148 = scmp.eq.s32.totalorder %s34, 0
      %p149 = por %p147, %p148
      %p150 = scmp.ne.s32.totalorder %s138, %s139
      %p151 = scmp.eq.s32.totalorder %s35, 1
      %p152 = por %p150, %p151
      %p154 = scmp.ne.s32.totalorder %s139, %s153
      %p155 = scmp.eq.s32.totalorder %s35, 0
      %p156 = por %p154, %p155
      %s157 = ssub.s32 %s29, %s36
      %p158 = scmp.eq.s32.totalorder %s157, 0
      %s160 = sadd.s32 %s159, 1
      %s161 = scalar_select %p158, %s159, %s160
      %p164 = pneg %p158
      %p165 = scmp.eq.s32.totalorder %s29, 1
      %p166 = por %p164, %p165
      %p167 = scmp.ne.s32.totalorder %s159, %s162
      %p168 = scmp.eq.s32.totalorder %s29, 0
      %p169 = por %p167, %p168
      %p170 = scmp.ne.s32.totalorder %s159, %s162
      %p171 = scmp.eq.s32.totalorder %s34, 1
      %p172 = por %p170, %p171
      %p173 = scmp.ne.s32.totalorder %s162, %s163
      %p174 = scmp.eq.s32.totalorder %s34, 0
      %p175 = por %p173, %p174
      %p176 = scmp.ne.s32.totalorder %s162, %s163
      %p177 = scmp.eq.s32.totalorder %s35, 1
      %p178 = por %p176, %p177
      %p180 = scmp.ne.s32.totalorder %s163, %s179
      %p181 = scmp.eq.s32.totalorder %s35, 0
      %p182 = por %p180, %p181
      %p183 = scmp.le.s32.totalorder 1, %s29
      %p184 = scmp.lt.s32.totalorder %s29, 3
      %p185 = pnand %p183, %p184
      %p186 = pneg %p185
      // Predicated region
      $region9: #{tpu_custom_call.1} parent=5 // pred_check
        _
      $region10: #{tpu_custom_call.1} parent=5 // pred_check_branch
        %188 = sbr.rel (%p185) target = $region12
      $region11: #{tpu_custom_call.1} parent=5 // pred_region
        %s189 = ssub.s32 %s29, 1
        // Predicated region
        $region13: #{tpu_custom_call.1} parent=11 // pred_check
          %p190 = pneg %p128
        $region14: #{tpu_custom_call.1} parent=11 // pred_check_branch
          %192 = sbr.rel (%p190) target = $region16
        $region15: #{tpu_custom_call.1} parent=11 // pred_region
          _
        $region16: #{tpu_custom_call.1} parent=11 // pred_fallthru
          _
        // Predicated region
        $region17: #{tpu_custom_call.1} parent=11 // pred_check
          %p193 = pneg %p149
        $region18: #{tpu_custom_call.1} parent=11 // pred_check_branch
          %195 = sbr.rel (%p193) target = $region20
        $region19: #{tpu_custom_call.1} parent=11 // pred_region
          _
        $region20: #{tpu_custom_call.1} parent=11 // pred_fallthru
          _
      $region12: #{tpu_custom_call.1} parent=5 // pred_fallthru
        _
      %p196 = scmp.lt.s32.totalorder %s29, 2
      // Predicated region
      $region21: #{tpu_custom_call.1} parent=5 // pred_check
        %p197 = pneg %p196
      $region22: #{tpu_custom_call.1} parent=5 // pred_check_branch
        %199 = sbr.rel (%p197) target = $region24
      $region23: #{tpu_custom_call.1} parent=5 // pred_region
        // Predicated region
        $region25: #{tpu_custom_call.1} parent=23 // pred_check
          %p200 = pneg %p49
        $region26: #{tpu_custom_call.1} parent=23 // pred_check_branch
          %202 = sbr.rel (%p200) target = $region28
        $region27: #{tpu_custom_call.1} parent=23 // pred_region
          %s203 = sand.u32 %s39, 1
          %s204 = scalar_lea.sflag [#allocation5], %s203
          %s205 = sand.u32 %s39, 1
          %s206 = smul.addr %s205, 8
          %s207 = scalar_lea.vmem [#allocation4], %s206
          %209 = vsyncadd %s204, 0
          %s210 = smul.addr %s29, 2
          %s211 = smul.addr %s210, 4
          %s212 = scalar_lea.hbm %s1, %s211
          %s214 = sshll.u32 %s212, 4
          %s215 = int_to_ptr.hbm [resolvable:$true] %s214
          %s216 = sshll.u32 %s207, 4
          %s217 = int_to_ptr.vmem [resolvable:$true] %s216
          %219 = dma.hbm_to_vmem [thread:$0]  %s215, 128, %s217, %s204
        $region28: #{tpu_custom_call.1} parent=23 // pred_fallthru
          _
        // Predicated region
        $region29: #{tpu_custom_call.1} parent=23 // pred_check
          %p220 = pneg %p75
        $region30: #{tpu_custom_call.1} parent=23 // pred_check_branch
          %222 = sbr.rel (%p220) target = $region32
        $region31: #{tpu_custom_call.1} parent=23 // pred_region
          %s223 = sand.u32 %s65, 1
          %s224 = scalar_lea.sflag [#allocation8], %s223
          %s225 = sand.u32 %s65, 1
          %s226 = smul.addr %s225, 8
          %s227 = scalar_lea.vmem [#allocation7], %s226
          %229 = vsyncadd %s224, 0
          %s230 = smul.addr %s29, 2
          %s231 = smul.addr %s230, 4
          %s232 = scalar_lea.hbm %s2, %s231
          %s234 = sshll.u32 %s232, 4
          %s235 = int_to_ptr.hbm [resolvable:$true] %s234
          %s236 = sshll.u32 %s227, 4
          %s237 = int_to_ptr.vmem [resolvable:$true] %s236
          %239 = dma.hbm_to_vmem [thread:$0]  %s235, 128, %s237, %s224
        $region32: #{tpu_custom_call.1} parent=23 // pred_fallthru
          _
        // Predicated region
        $region33: #{tpu_custom_call.1} parent=23 // pred_check
          %p240 = pneg %p101
        $region34: #{tpu_custom_call.1} parent=23 // pred_check_branch
          %242 = sbr.rel (%p240) target = $region36
        $region35: #{tpu_custom_call.1} parent=23 // pred_region
          %p243 = scmp.lt.s32.totalorder %s29, 1
          %s244 = scalar_select %p243, %s29, 1
          %s245 = smul.addr %s244, 4
          %s246 = scalar_lea.vmem %s3, %s245
        $region36: #{tpu_custom_call.1} parent=23 // pred_fallthru
          _
      $region24: #{tpu_custom_call.1} parent=5 // pred_fallthru
        _
      %p247 = scmp.le.s32.totalorder 1, %s29
      %p248 = scmp.lt.s32.totalorder %s29, 3
      %p249 = pnand %p247, %p248
      %p250 = pneg %p249
      // Predicated region
      $region37: #{tpu_custom_call.1} parent=5 // pred_check
        _
      $region38: #{tpu_custom_call.1} parent=5 // pred_check_branch
        %252 = sbr.rel (%p249) target = $region40
      $region39: #{tpu_custom_call.1} parent=5 // pred_region
        %s253 = ssub.s32 %s29, 1
        %s254 = sand.u32 %s42, 1
        %s255 = scalar_lea.sflag [#allocation5], %s254
        %s256 = sand.u32 %s42, 1
        %s257 = smul.addr %s256, 8
        %s258 = scalar_lea.vmem [#allocation4], %s257
        // Predicated region
        $region41: #{tpu_custom_call.1} parent=39 // pred_check
          %p259 = pneg %p55
        $region42: #{tpu_custom_call.1} parent=39 // pred_check_branch
          %261 = sbr.rel (%p259) target = $region44
        $region43: #{tpu_custom_call.1} parent=39 // pred_region
          %263 = dma.done %s255, 128
        $region44: #{tpu_custom_call.1} parent=39 // pred_fallthru
          _
        %s264 = sand.u32 %s68, 1
        %s265 = scalar_lea.sflag [#allocation8], %s264
        %s266 = sand.u32 %s68, 1
        %s267 = smul.addr %s266, 8
        %s268 = scalar_lea.vmem [#allocation7], %s267
        // Predicated region
        $region45: #{tpu_custom_call.1} parent=39 // pred_check
          %p269 = pneg %p81
        $region46: #{tpu_custom_call.1} parent=39 // pred_check_branch
          %271 = sbr.rel (%p269) target = $region48
        $region47: #{tpu_custom_call.1} parent=39 // pred_region
          %273 = dma.done %s265, 128
        $region48: #{tpu_custom_call.1} parent=39 // pred_fallthru
          _
        %s274 = sand.u32 %s42, 1
        %s275 = scalar_lea.sflag [#allocation5], %s274
        %s276 = sand.u32 %s42, 1
        %s277 = smul.addr %s276, 8
        %s278 = scalar_lea.vmem [#allocation4], %s277
        %p279 = pneg %p55
        %p280 = pneg %p52
        %s281 = sand.u32 %s68, 1
        %s282 = scalar_lea.sflag [#allocation8], %s281
        %s283 = sand.u32 %s68, 1
        %s284 = smul.addr %s283, 8
        %s285 = scalar_lea.vmem [#allocation7], %s284
        %p286 = pneg %p81
        %p287 = pneg %p78
        %p288 = scmp.lt.s32.totalorder %s34, 1
        %s289 = scalar_select %p288, %s34, 1
        %s290 = smul.addr %s289, 4
        %s291 = scalar_lea.vmem %s3, %s290
        %p292 = pneg %p107
        %p293 = pneg %p104
        %p294 = pneg %p128
        %p295 = pneg %p125
        %p296 = pneg %p149
        %p297 = pneg %p146
        %p298 = pneg %p175
        %p299 = pneg %p172
        %s300 = sand.u32 %s162, 1
        %s301 = scalar_lea.sflag [#allocation6], %s300
        %s302 = sand.u32 %s162, 1
        %s303 = smul.addr %s302, 8
        %s304 = scalar_lea.vmem [#allocation9], %s303
        %p305 = scmp.lt.s32.totalorder %s34, 1
        %s306 = scalar_select %p305, %s34, 1
        %s307 = smul.addr %s306, 4
        %s308 = scalar_lea.vmem %s3, %s307
        %s309 = smul.u32 %s34, 128
        %s310 = sld [smem:[#allocation3 + %s309]]
        %s311 = sadd.s32 %s309, 1
        %s312 = sld [smem:[#allocation3 + %s311]]
        %s313 = sadd.s32 %s309, 2
        %s314 = sld [smem:[#allocation3 + %s313]]
        %s315 = sadd.s32 %s309, 3
        %s316 = sld [smem:[#allocation3 + %s315]]
        %s317 = sadd.s32 %s309, 4
        %s318 = sld [smem:[#allocation3 + %s317]]
        %s319 = sadd.s32 %s309, 5
        %s320 = sld [smem:[#allocation3 + %s319]]
        %s321 = sadd.s32 %s309, 6
        %s322 = sld [smem:[#allocation3 + %s321]]
        %s323 = sadd.s32 %s309, 7
        %s324 = sld [smem:[#allocation3 + %s323]]
        %v325 = vld [vmem:[%s258] sm:$0xff]
        %v326 = vld [vmem:[%s268] sm:$0xff]
        %v327 = vld [vmem:[%s308] sm:$0xf]
        %v328 = vld [vmem:[%s4] sm:$0xf]
        %v329 = vld [vmem:[%s5] sm:$0xf]
        %331 = vset.pattern.permute.xlu0 0
        %332 = vperm.xlu0 %331, %v329
        %v333 = vpop.permute.xlu0 %332
        %v336 = vperm.slane %v326, 0
        %v337 = vperm.slane %v326, 4
        %v340 = vperm.slane %v336, 0
        %v341 = vperm.slane %v337, 0
        %v342 = vmul.f32 %v333, %v340
        %v343 = vmul.f32 %v333, %v341
        %344 = vset.pattern.permute.xlu0 1
        %345 = vperm.xlu0 %344, %v329
        %v346 = vpop.permute.xlu0 %345
        %v348 = vperm.slane %v326, 1
        %v349 = vperm.slane %v326, 5
        %v352 = vperm.slane %v348, 1
        %v353 = vperm.slane %v349, 1
        %v354 = vmul.f32 %v346, %v352
        %v355 = vmul.f32 %v346, %v353
        %v356 = vadd.f32 %v342, %v354
        %v357 = vadd.f32 %v343, %v355
        %358 = vset.pattern.permute.xlu0 2
        %359 = vperm.xlu0 %358, %v329
        %v360 = vpop.permute.xlu0 %359
        %v362 = vperm.slane %v326, 2
        %v363 = vperm.slane %v326, 6
        %v366 = vperm.slane %v362, 2
        %v367 = vperm.slane %v363, 2
        %v368 = vmul.f32 %v360, %v366
        %v369 = vmul.f32 %v360, %v367
        %v370 = vadd.f32 %v356, %v368
        %v371 = vadd.f32 %v357, %v369
        %372 = vset.pattern.permute.xlu0 3
        %373 = vperm.xlu0 %372, %v329
        %v374 = vpop.permute.xlu0 %373
        %v376 = vperm.slane %v326, 3
        %v377 = vperm.slane %v326, 7
        %v380 = vperm.slane %v376, 3
        %v381 = vperm.slane %v377, 3
        %v382 = vmul.f32 %v374, %v380
        %v383 = vmul.f32 %v374, %v381
        %v384 = vadd.f32 %v370, %v382
        %v385 = vadd.f32 %v371, %v383
        %387 = vset.pattern.permute.xlu0 0
        %388 = vperm.xlu0 %387, %v327
        %v389 = vpop.permute.xlu0 %388
        %v391 = vadd.f32 %v384, %v389
        %v392 = vadd.f32 %v385, %v389
        %394 = vset.pattern.permute.xlu0 0
        %395 = vperm.xlu0 %394, %v328
        %v396 = vpop.permute.xlu0 %395
        %v399 = vperm.slane %v325, 0
        %v400 = vperm.slane %v325, 4
        %v403 = vperm.slane %v399, 0
        %v404 = vperm.slane %v400, 0
        %v405 = vmul.f32 %v396, %v403
        %v406 = vmul.f32 %v396, %v404
        %407 = vset.pattern.permute.xlu0 1
        %408 = vperm.xlu0 %407, %v328
        %v409 = vpop.permute.xlu0 %408
        %v411 = vperm.slane %v325, 1
        %v412 = vperm.slane %v325, 5
        %v415 = vperm.slane %v411, 1
        %v416 = vperm.slane %v412, 1
        %v417 = vmul.f32 %v409, %v415
        %v418 = vmul.f32 %v409, %v416
        %v419 = vadd.f32 %v405, %v417
        %v420 = vadd.f32 %v406, %v418
        %421 = vset.pattern.permute.xlu0 2
        %422 = vperm.xlu0 %421, %v328
        %v423 = vpop.permute.xlu0 %422
        %v425 = vperm.slane %v325, 2
        %v426 = vperm.slane %v325, 6
        %v429 = vperm.slane %v425, 2
        %v430 = vperm.slane %v426, 2
        %v431 = vmul.f32 %v423, %v429
        %v432 = vmul.f32 %v423, %v430
        %v433 = vadd.f32 %v419, %v431
        %v434 = vadd.f32 %v420, %v432
        %435 = vset.pattern.permute.xlu0 3
        %436 = vperm.xlu0 %435, %v328
        %v437 = vpop.permute.xlu0 %436
        %v439 = vperm.slane %v325, 3
        %v440 = vperm.slane %v325, 7
        %v443 = vperm.slane %v439, 3
        %v444 = vperm.slane %v440, 3
        %v445 = vmul.f32 %v437, %v443
        %v446 = vmul.f32 %v437, %v444
        %v447 = vadd.f32 %v433, %v445
        %v448 = vadd.f32 %v434, %v446
        %v449 = vadd.f32 %v447, %v391
        %v450 = vadd.f32 %v448, %v392
        %v451 = vstv %s310
        %v452 = vmul.f32 %v451, %v449
        %v453 = vmul.f32 %v451, %v450
        %v456 = vrot.slane %v453, 4
        %vm457 = vcmask 1043456
        %v458 = vsel %vm457, %v452, %v456
        %v460 = vsub.f32 %v325, %v458
        %v461 = vstv %s312
        %v462 = vmul.f32 %v460, %v461
        %v463 = vstv %s314
        %v464 = vmul.f32 %v463, %v462
        %v465 = vstv %s316
        %v466 = vmul.f32 %v465, %v449
        %v467 = vmul.f32 %v465, %v450
        %v470 = vrot.slane %v467, 4
        %v471 = vsel %vm457, %v466, %v470
        %v473 = vadd.f32 %v464, %v471
        %v475 = vperm.slane %v473, 0
        %v476 = vperm.slane %v473, 4
        %v479 = vperm.slane %v475, 0
        %v480 = vperm.slane %v476, 0
        %v481 = vmul.f32 %v396, %v479
        %v482 = vmul.f32 %v396, %v480
        %v483 = vperm.slane %v473, 1
        %v484 = vperm.slane %v473, 5
        %v487 = vperm.slane %v483, 1
        %v488 = vperm.slane %v484, 1
        %v489 = vmul.f32 %v409, %v487
        %v490 = vmul.f32 %v409, %v488
        %v491 = vadd.f32 %v481, %v489
        %v492 = vadd.f32 %v482, %v490
        %v493 = vperm.slane %v473, 2
        %v494 = vperm.slane %v473, 6
        %v497 = vperm.slane %v493, 2
        %v498 = vperm.slane %v494, 2
        %v499 = vmul.f32 %v423, %v497
        %v500 = vmul.f32 %v423, %v498
        %v501 = vadd.f32 %v491, %v499
        %v502 = vadd.f32 %v492, %v500
        %v503 = vperm.slane %v473, 3
        %v504 = vperm.slane %v473, 7
        %v507 = vperm.slane %v503, 3
        %v508 = vperm.slane %v504, 3
        %v509 = vmul.f32 %v437, %v507
        %v510 = vmul.f32 %v437, %v508
        %v511 = vadd.f32 %v501, %v509
        %v512 = vadd.f32 %v502, %v510
        %v513 = vadd.f32 %v511, %v391
        %v514 = vadd.f32 %v512, %v392
        %v515 = vstv %s318
        %v516 = vmul.f32 %v515, %v473
        %v517 = vstv %s320
        %v518 = vmul.f32 %v517, %v513
        %v519 = vmul.f32 %v517, %v514
        %v522 = vrot.slane %v519, 4
        %v523 = vsel %vm457, %v518, %v522
        %v525 = vsub.f32 %v516, %v523
        %v526 = vmax.f32 %v525, -1.0
        %v527 = vmin.f32 %v526, 1.0
        %v528 = vstv %s322
        %v529 = vmul.f32 %v528, %v527
        %v530 = vstv %s324
        %v531 = vmul.f32 %v530, %v473
        %v532 = vadd.f32 %v529, %v531
        %533 = vst [vmem:[%s304] sm:$0xff] %v532
        %s534 = sand.u32 %s162, 1
        %s535 = scalar_lea.sflag [#allocation6], %s534
        %s536 = sand.u32 %s162, 1
        %s537 = smul.addr %s536, 8
        %s538 = scalar_lea.vmem [#allocation9], %s537
        // Predicated region
        $region49: #{tpu_custom_call.1} parent=39 // pred_check
          %p539 = pneg %p172
        $region50: #{tpu_custom_call.1} parent=39 // pred_check_branch
          %541 = sbr.rel (%p539) target = $region52
        $region51: #{tpu_custom_call.1} parent=39 // pred_region
          %543 = vsyncadd %s535, 0
          %s544 = smul.addr %s34, 2
          %s545 = smul.addr %s544, 4
          %s546 = scalar_lea.hbm %s6, %s545
          %s548 = sshll.u32 %s538, 4
          %s549 = int_to_ptr.vmem [resolvable:$true] %s548
          %s550 = sshll.u32 %s546, 4
          %s551 = int_to_ptr.hbm [resolvable:$true] %s550
          %553 = dma.vmem_to_hbm [thread:$0]  %s549, 128, %s551, %s535
        $region52: #{tpu_custom_call.1} parent=39 // pred_fallthru
          _
      $region40: #{tpu_custom_call.1} parent=5 // pred_fallthru
        _
      %p554 = scmp.le.s32.totalorder 2, %s29
      // Predicated region
      $region53: #{tpu_custom_call.1} parent=5 // pred_check
        %p555 = pneg %p554
      $region54: #{tpu_custom_call.1} parent=5 // pred_check_branch
        %557 = sbr.rel (%p555) target = $region56
      $region55: #{tpu_custom_call.1} parent=5 // pred_region
        %s558 = ssub.s32 %s29, 2
        // Predicated region
        $region57: #{tpu_custom_call.1} parent=55 // pred_check
          %p559 = pneg %p178
        $region58: #{tpu_custom_call.1} parent=55 // pred_check_branch
          %561 = sbr.rel (%p559) target = $region60
        $region59: #{tpu_custom_call.1} parent=55 // pred_region
          %s562 = sand.u32 %s163, 1
          %s563 = scalar_lea.sflag [#allocation6], %s562
          %s564 = sand.u32 %s163, 1
          %s565 = smul.addr %s564, 8
          %s566 = scalar_lea.vmem [#allocation9], %s565
          %568 = dma.done %s563, 128
        $region60: #{tpu_custom_call.1} parent=55 // pred_fallthru
          _
      $region56: #{tpu_custom_call.1} parent=5 // pred_fallthru
        _
    $region6: #{tpu_custom_call.1} parent=1 // loop_footer
      %s33 = sadd.s32 1, %s29
    $region7: #{tpu_custom_call.1} parent=1 // loop_footer_branch
      %28 = sbr.rel target = $region3
    $region8: #{tpu_custom_call.1} parent=1 // loop_exit
      _
    %569 = vsyncpa [#allocation5], 1
    %s570 = scalar_lea.sflag [#allocation5], 1
    %571 = vsyncpa %s570, 1
    %572 = vsyncpa [#allocation8], 1
    %s573 = scalar_lea.sflag [#allocation8], 1
    %574 = vsyncpa %s573, 1
    %575 = vsyncpa [#allocation6], 1
    %s576 = scalar_lea.sflag [#allocation6], 1
    %577 = vsyncpa %s576, 1

</llo_original>
